<compile_context>
chip_gen: v7x
topology: tpu7x:2x2x1
jax: 0.10.0
libtpu: 0.0.40
codegen_flags: <defaults>
</compile_context>

<pallas_src>
import numpy as np

import jax
import jax.numpy as jnp
from jax.experimental import pallas as pl
from jax.experimental.pallas import tpu as pltpu


def _round_up(a: int, b: int) -> int:
    return (a + b - 1) // b * b


def _vmem_capacity_bytes() -> int:
    """Per-core VMEM capacity; conservative (v7x) fallback if the query fails."""
    try:
        return int(pltpu.get_tpu_info().vmem_capacity_bytes)
    except Exception:
        return 64 << 20


def _pick_tm(M: int, target: int) -> int:
    """M tile: single tile when small, otherwise an even number of 8-aligned
    tiles (balanced across the two TensorCores on v7x)."""
    if M <= max(256, target // 2):
        return M
    n_tiles = max(2, pl.cdiv(M, target))
    if n_tiles % 2 == 1:
        n_tiles += 1
    return min(_round_up(pl.cdiv(M, n_tiles), 8), _round_up(M, 8))


def _pick_tiles(M, K, N_pad, in_b, out_b, vmem_cap):
    budget = max(vmem_cap - (16 << 20), 24 << 20)     # headroom for Mosaic internals

    # N tiling: keep the whole (K, N_pad) weight VMEM-resident when it is
    # comfortably small (ViT-scale weights are only a few MiB); otherwise use
    # even 128-multiple tiles.
    if 2 * K * N_pad * in_b <= budget // 3:
        TN = N_pad
    else:
        TN = 512
        while TN > 128 and N_pad % TN != 0:
            TN -= 128

    tm_target = 1024 if vmem_cap >= (96 << 20) else 512   # v5e/v6e vs v7x
    TM = _pick_tm(M, tm_target)

    TK = K

    def tiles_bytes(tm, tn, tk):
        return (2 * (tm * tk + tk * tn) * in_b   # double-buffered streamed inputs
                + 2 * tn * 4                     # bias
                + 2 * tm * tn * out_b            # output
                + tm * tn * 4)                   # f32 accumulator scratch

    while tiles_bytes(TM, TN, TK) > budget:
        if TM > 512:
            TM = 512
        elif TM > 256:
            TM = 256
        elif TK > 512:
            TK = 512                             # K-tiling fallback (3rd grid axis)
        else:
            break
    return TM, TN, TK, tiles_bytes(TM, TN, TK)


def _patch_embed_kernel(p_ref, w_ref, b_ref, o_ref, acc_ref):
    # p_ref: (TM, TK) patch tile; w_ref: (TK, TN) weight tile;
    # b_ref: (1, TN) bias (f32); o_ref: (TM, TN); acc_ref: f32 accumulator.
    k = pl.program_id(2)

    @pl.when(k == 0)
    def _init():
        acc_ref[...] = jnp.zeros_like(acc_ref)

    acc_ref[...] += jnp.dot(p_ref[...], w_ref[...],
                            preferred_element_type=jnp.float32)

    @pl.when(k == pl.num_programs(2) - 1)
    def _finalize():
        o_ref[...] = (acc_ref[...] + b_ref[...]).astype(o_ref.dtype)


def prepare_patch_embed_params(weight, bias, compute_dtype=jnp.bfloat16):
    """One-time (hoistable) parameter transform.

    weight: (E, C, ph, pw) Conv2d weight; bias: (E,).
    Returns (w_mat, b_row) with the output dim zero-padded to a multiple of
    128 so the kernel's output last dim is lane-dense.
    """
    E = weight.shape[0]
    K = weight.shape[1] * weight.shape[2] * weight.shape[3]
    n_pad = _round_up(E, 128)
    w_mat = weight.reshape(E, K).T.astype(compute_dtype)            # (K, E)
    w_mat = jnp.pad(w_mat, ((0, 0), (0, n_pad - E)))                # (K, N_pad)
    b_row = jnp.pad(bias.astype(jnp.float32), (0, n_pad - E)).reshape(1, n_pad)
    return w_mat, b_row


def patch_embed_apply(x, w_mat, b_row, patch_size, embed_dim, out_dtype=None):
    """x: (B, C, H, W); w_mat: (K, N_pad); b_row: (1, N_pad).

    Returns (B, num_patches, embed_dim) in `out_dtype` (default = compute
    dtype) — PatchEmbed.forward with norm_layer=None, flatten=True.
    """
    B, C, H, W = x.shape
    ph, pw = patch_size
    assert H % ph == 0 and W % pw == 0, "image size must be divisible by patch size"
    gh, gw = H // ph, W // pw
    num_patches = gh * gw
    K = C * ph * pw
    N_pad = w_mat.shape[1]
    compute_dtype = w_mat.dtype
    out_dtype = compute_dtype if out_dtype is None else out_dtype

    # im2col glue (see module-level TODO about fusing this into the kernel):
    # one reshape+transpose+cast of the activations, flattening each patch in
    # (C, ph, pw) order to match the Conv2d weight layout.
    patches = (
        x.reshape(B, C, gh, ph, gw, pw)
        .transpose(0, 2, 4, 1, 3, 5)                  # (B, gh, gw, C, ph, pw)
        .reshape(B * num_patches, K)
        .astype(compute_dtype)
    )

    M = B * num_patches
    in_b = np.dtype(compute_dtype).itemsize
    out_b = np.dtype(out_dtype).itemsize
    vmem_cap = _vmem_capacity_bytes()
    TM, TN, TK, tile_bytes = _pick_tiles(M, K, N_pad, in_b, out_b, vmem_cap)

    # K-tiling fallback: zero-pad K so every (TK) block is in-bounds (padded
    # zeros contribute nothing to the accumulator).  Only hit for very large K.
    if TK < K:
        K_pad = _round_up(K, TK)
        patches = jnp.pad(patches, ((0, 0), (0, K_pad - K)))
        w = jnp.pad(w_mat, ((0, K_pad - K), (0, 0)))
    else:
        K_pad = K
        w = w_mat

    grid_n = pl.cdiv(N_pad, TN)
    grid_m = pl.cdiv(M, TM)
    grid_k = pl.cdiv(K_pad, TK)
    grid = (grid_n, grid_m, grid_k)     # N outer, M middle, K inner (reduction)

    # Accurate HBM traffic under this grid ordering: weight is fetched once
    # per N tile when K is untiled (constant block index across M), and once
    # per (N, M) tile when K is tiled; patches re-stream once per N tile.
    w_fetches = grid_n * (grid_m if grid_k > 1 else 1)
    cost = pl.CostEstimate(
        flops=2 * M * K_pad * N_pad,
        bytes_accessed=(M * K_pad * in_b * grid_n
                        + K_pad * TN * in_b * w_fetches
                        + N_pad * 4
                        + M * N_pad * out_b),
        transcendentals=0,
    )

    vmem_limit = int(min(max(tile_bytes + (8 << 20), 32 << 20),
                         max(vmem_cap - (8 << 20), 32 << 20)))

    out = pl.pallas_call(
        _patch_embed_kernel,
        out_shape=jax.ShapeDtypeStruct((M, N_pad), out_dtype),
        grid_spec=pltpu.PrefetchScalarGridSpec(
            num_scalar_prefetch=0,
            grid=grid,
            in_specs=[
                pl.BlockSpec((TM, TK), lambda j, i, k: (i, k)),   # patches (streamed)
                pl.BlockSpec((TK, TN), lambda j, i, k: (k, j)),   # weight (resident when grid_n=grid_k=1)
                pl.BlockSpec((1, TN), lambda j, i, k: (0, j)),    # bias
            ],
            out_specs=pl.BlockSpec((TM, TN), lambda j, i, k: (i, j)),
            scratch_shapes=[pltpu.VMEM((TM, TN), jnp.float32)],
        ),
        compiler_params=pltpu.CompilerParams(
            dimension_semantics=("parallel", "parallel", "arbitrary"),
            vmem_limit_bytes=vmem_limit,
        ),
        cost_estimate=cost,
    )(patches, w, b_row)

    return out[:, :embed_dim].reshape(B, num_patches, embed_dim)


def patch_embed(x, weight, bias, patch_size,
                compute_dtype=jnp.bfloat16, out_dtype=None):
    """Convenience wrapper: weight (E, C, ph, pw), bias (E,)."""
    w_mat, b_row = prepare_patch_embed_params(weight, bias, compute_dtype)
    return patch_embed_apply(x, w_mat, b_row, patch_size, weight.shape[0],
                             out_dtype=out_dtype)


def reference_patch_embed(x, weight, bias, patch_size):
    """Pure-JAX reference: strided conv (== PyTorch Conv2d) then flatten+transpose."""
    y = jax.lax.conv_general_dilated(
        x, weight,
        window_strides=patch_size,
        padding="VALID",
        dimension_numbers=("NCHW", "OIHW", "NCHW"),
    ) + bias.reshape(1, -1, 1, 1)
    B, E, gh, gw = y.shape
    return y.reshape(B, E, gh * gw).transpose(0, 2, 1)


if __name__ == "__main__":
    # Small shapes consistent with the module: img_size=16, patch_size=4,
    # in_chans=4, embed_dim=32, batch=2.
    B, C, H, W = 2, 4, 16, 16
    ph, pw = 4, 4
    embed_dim = 32

    key = jax.random.PRNGKey(0)
    kx, kw, kb = jax.random.split(key, 3)
    x = jax.random.normal(kx, (B, C, H, W), dtype=jnp.float32)
    weight = jax.random.normal(kw, (embed_dim, C, ph, pw), dtype=jnp.float32) * 0.02
    bias = jax.random.normal(kb, (embed_dim,), dtype=jnp.float32) * 0.02

    ref = reference_patch_embed(x, weight, bias, (ph, pw))

    # f32 compute + f32 output: exact-precision check.
    out_f32 = jax.block_until_ready(
        patch_embed(x, weight, bias, (ph, pw),
                    compute_dtype=jnp.float32, out_dtype=jnp.float32))
    assert out_f32.shape == (B, (H // ph) * (W // pw), embed_dim), out_f32.shape
    assert jnp.allclose(out_f32, ref, atol=1e-4, rtol=1e-4), \
        float(jnp.max(jnp.abs(out_f32 - ref)))

    # bf16 compute, bf16 output (default; MXU- and HBM-optimal): loose tolerance.
    out_bf16 = jax.block_until_ready(patch_embed(x, weight, bias, (ph, pw)))
    assert out_bf16.dtype == jnp.bfloat16, out_bf16.dtype
    assert out_bf16.shape == (B, (H // ph) * (W // pw), embed_dim), out_bf16.shape
    diff = jnp.max(jnp.abs(out_bf16.astype(jnp.float32) - ref))
    assert jnp.allclose(out_bf16.astype(jnp.float32), ref, atol=2e-2, rtol=2e-2), float(diff)

    print("KERNEL_OK")
</pallas_src>

<mosaic_0001>
module attributes {stable_mosaic.version = 11 : i64} {
  func.func @_patch_embed_kernel(%arg0: i32, %arg1: i32, %arg2: i32, %arg3: memref<32x64xf32, #tpu.memory_space<vmem>>, %arg4: memref<64x128xf32, #tpu.memory_space<vmem>>, %arg5: memref<1x128xf32, #tpu.memory_space<vmem>>, %arg6: memref<32x128xf32, #tpu.memory_space<vmem>>, %arg7: memref<32x128xf32, #tpu.memory_space<vmem>>) attributes {dimension_semantics = [#tpu.dimension_semantics<parallel>, #tpu.dimension_semantics<parallel>, #tpu.dimension_semantics<arbitrary>], iteration_bounds = array<i64: 1, 1, 1>, scalar_prefetch = 0 : i64, scratch_operands = 1 : i64, tpu.core_type = #tpu.core_type<tc>, window_params = [{transform_indices = @transform_0, window_bounds = array<i64: 32, 64>}, {transform_indices = @transform_1, window_bounds = array<i64: 64, 128>}, {transform_indices = @transform_2, window_bounds = array<i64: 1, 128>}, {transform_indices = @transform_3, window_bounds = array<i64: 32, 128>}]} {
    %c0_i32 = arith.constant 0 : i32
    %0 = arith.cmpi eq, %arg2, %c0_i32 : i32
    %1 = arith.extui %0 : i1 to i32
    %c0_i32_0 = arith.constant 0 : i32
    %2 = arith.cmpi ne, %1, %c0_i32_0 : i32
    scf.if %2 {
      %cst_10 = arith.constant 0.000000e+00 : f32
      %12 = vector.broadcast %cst_10 : f32 to vector<32x128xf32>
      %c0_11 = arith.constant 0 : index
      %c0_12 = arith.constant 0 : index
      %13 = vector.load %arg7[%c0_11, %c0_12] : memref<32x128xf32, #tpu.memory_space<vmem>>, vector<32x128xf32>
      tpu.vector_store %arg7[%c0_11, %c0_12], %12 {strides = array<i32>} : memref<32x128xf32, #tpu.memory_space<vmem>>, vector<32x128xf32>,
    } else {
    }
    %c0 = arith.constant 0 : index
    %c0_1 = arith.constant 0 : index
    %3 = vector.load %arg7[%c0, %c0_1] : memref<32x128xf32, #tpu.memory_space<vmem>>, vector<32x128xf32>
    %c0_2 = arith.constant 0 : index
    %c0_3 = arith.constant 0 : index
    %4 = vector.load %arg3[%c0_2, %c0_3] : memref<32x64xf32, #tpu.memory_space<vmem>>, vector<32x64xf32>
    %c0_4 = arith.constant 0 : index
    %c0_5 = arith.constant 0 : index
    %5 = vector.load %arg4[%c0_4, %c0_5] : memref<64x128xf32, #tpu.memory_space<vmem>>, vector<64x128xf32>
    %cst = arith.constant dense<0.000000e+00> : vector<32x128xf32>
    %6 = tpu.matmul %4, %5, %cst {dimension_numbers = #tpu.dot_dimension_numbers<[1], [0], [0], [1], [0, 0, 1, 1], [], []>} : vector<32x64xf32>, vector<64x128xf32>, vector<32x128xf32> -> vector<32x128xf32>
    %7 = arith.addf %3, %6 : vector<32x128xf32>
    %c0_6 = arith.constant 0 : index
    %c0_7 = arith.constant 0 : index
    %8 = vector.load %arg7[%c0_6, %c0_7] : memref<32x128xf32, #tpu.memory_space<vmem>>, vector<32x128xf32>
    tpu.vector_store %arg7[%c0_6, %c0_7], %7 {strides = array<i32>} : memref<32x128xf32, #tpu.memory_space<vmem>>, vector<32x128xf32>,
    %c0_i32_8 = arith.constant 0 : i32
    %9 = arith.cmpi eq, %arg2, %c0_i32_8 : i32
    %10 = arith.extui %9 : i1 to i32
    %c0_i32_9 = arith.constant 0 : i32
    %11 = arith.cmpi ne, %10, %c0_i32_9 : i32
    scf.if %11 {
      %c0_10 = arith.constant 0 : index
      %c0_11 = arith.constant 0 : index
      %12 = vector.load %arg7[%c0_10, %c0_11] : memref<32x128xf32, #tpu.memory_space<vmem>>, vector<32x128xf32>
      %c0_12 = arith.constant 0 : index
      %c0_13 = arith.constant 0 : index
      %13 = vector.load %arg5[%c0_12, %c0_13] : memref<1x128xf32, #tpu.memory_space<vmem>>, vector<1x128xf32>
      %14 = vector.broadcast %13 : vector<1x128xf32> to vector<32x128xf32>
      %15 = arith.addf %12, %14 : vector<32x128xf32>
      %c0_14 = arith.constant 0 : index
      %c0_15 = arith.constant 0 : index
      %16 = vector.load %arg6[%c0_14, %c0_15] : memref<32x128xf32, #tpu.memory_space<vmem>>, vector<32x128xf32>
      tpu.vector_store %arg6[%c0_14, %c0_15], %15 {strides = array<i32>} : memref<32x128xf32, #tpu.memory_space<vmem>>, vector<32x128xf32>,
    } else {
    }
    return
  }
  func.func @transform_0(%arg0: i32, %arg1: i32, %arg2: i32) -> (i32, i32) {
    %c0_i32 = arith.constant 0 : i32
    return %arg1, %arg2 : i32, i32
  }
  func.func @transform_1(%arg0: i32, %arg1: i32, %arg2: i32) -> (i32, i32) {
    %c0_i32 = arith.constant 0 : i32
    return %arg2, %arg0 : i32, i32
  }
  func.func @transform_2(%arg0: i32, %arg1: i32, %arg2: i32) -> (i32, i32) {
    %c0_i32 = arith.constant 0 : i32
    %c0_i32_0 = arith.constant 0 : i32
    return %c0_i32, %arg0 : i32, i32
  }
  func.func @transform_3(%arg0: i32, %arg1: i32, %arg2: i32) -> (i32, i32) {
    %c0_i32 = arith.constant 0 : i32
    return %arg1, %arg0 : i32, i32
  }
}

</mosaic_0001>

<llo_original>
// kernel: tpu_custom_call.1
$region0: #{tpu_custom_call.1}
  #allocation0 [shape = 'u32[]', space=smem, size = 0x4, offset = 0x4, fixed_abs, tag = 'smem constant byte address 0x4 - core index']
  #allocation1 [shape = 'u32[144,128]{1,0:T(1,128)}', space=vmem, size = 0x12000, scoped, tag = 'internal scratch']
  #allocation2 [shape = 'f32[32,128]{1,0:T(8,128)}', space=vmem, size = 0x4000, scoped, tag = 'scratch operand']
  %s0 = inlined_call_operand.hbm [shape: f32[32,64], index: 0, kind: input, shape index: {}]
  %s1 = inlined_call_operand.hbm [shape: f32[64,128], index: 1, kind: input, shape index: {}]
  %s2 = inlined_call_operand.vmem [shape: f32[1,128], index: 2, kind: input, shape index: {}]
  %s3 = inlined_call_operand.hbm [shape: f32[32,128], index: 3, kind: output, shape index: {}]
  %s4 = sld [smem:[#allocation0]]
  $region38: #{tpu_custom_call.1} parent=0
    _
  %s6 = ssub.s32 1, %s4
  %s7 = scalar_select 0, %s6, %s4
  $region1: #{tpu_custom_call.1} parent=0
    #allocation3 [shape = 'u8[16384]{0}', space=vmem, size = 0x4000, scoped, tag = 'input window, operand 0, single buffered']
    #allocation4 [shape = 's32[1]{0}', space=sflag, size = 0x4, scoped, tag = 'scoped memory for tpu_custom_call.1']
    #allocation5 [shape = 's32[1]{0}', space=sflag, size = 0x4, scoped, tag = 'scoped memory for tpu_custom_call.1']
    #allocation6 [shape = 'u8[32768]{0}', space=vmem, size = 0x8000, scoped, tag = 'input window, operand 1, single buffered']
    #allocation7 [shape = 's32[1]{0}', space=sflag, size = 0x4, scoped, tag = 'scoped memory for tpu_custom_call.1']
    #allocation8 [shape = 'u8[16384]{0}', space=vmem, size = 0x4000, scoped, tag = 'output window, operand 0, single buffered']
    %8 = vsyncpa [#allocation4], 0
    %9 = vsyncpa [#allocation7], 0
    %10 = vsyncpa [#allocation5], 0
    // Predicated region
    $region2: #{tpu_custom_call.1} parent=1 // pred_check
      _
    $region3: #{tpu_custom_call.1} parent=1 // pred_check_branch
      %12 = sbr.rel (0) target = $region5
    $region4: #{tpu_custom_call.1} parent=1 // pred_region
      %s14 = ssub.s32 512, 512
      %15 = vsyncadd [#allocation4], %s14
      %s16 = sshll.u32 [#allocation3], 4
      %s17 = int_to_ptr.vmem [resolvable:$true] %s16
      %22 = dma.hbm_to_vmem [thread:$0]  %s0, 512, %s17, [#allocation4], 128, 128, 8
    $region5: #{tpu_custom_call.1} parent=1 // pred_fallthru
      _
    // Predicated region
    $region6: #{tpu_custom_call.1} parent=1 // pred_check
      _
    $region7: #{tpu_custom_call.1} parent=1 // pred_check_branch
      %24 = sbr.rel (0) target = $region9
    $region8: #{tpu_custom_call.1} parent=1 // pred_region
      %s26 = ssub.s32 1024, 1024
      %27 = vsyncadd [#allocation7], %s26
      %s28 = sshll.u32 [#allocation6], 4
      %s29 = int_to_ptr.vmem [resolvable:$true] %s28
      %34 = dma.hbm_to_vmem [thread:$0]  %s1, 1024, %s29, [#allocation7], 128, 128, 8
    $region9: #{tpu_custom_call.1} parent=1 // pred_fallthru
      _
    // Predicated region
    $region10: #{tpu_custom_call.1} parent=1 // pred_check
      _
    $region11: #{tpu_custom_call.1} parent=1 // pred_check_branch
      %36 = sbr.rel (0) target = $region13
    $region12: #{tpu_custom_call.1} parent=1 // pred_region
      _
    $region13: #{tpu_custom_call.1} parent=1 // pred_fallthru
      _
    // Predicated region
    $region14: #{tpu_custom_call.1} parent=1 // pred_check
      _
    $region15: #{tpu_custom_call.1} parent=1 // pred_check_branch
      %38 = sbr.rel (0) target = $region17
    $region16: #{tpu_custom_call.1} parent=1 // pred_region
      %39 = dma.done [#allocation4], 512
    $region17: #{tpu_custom_call.1} parent=1 // pred_fallthru
      _
    // Predicated region
    $region18: #{tpu_custom_call.1} parent=1 // pred_check
      _
    $region19: #{tpu_custom_call.1} parent=1 // pred_check_branch
      %41 = sbr.rel (0) target = $region21
    $region20: #{tpu_custom_call.1} parent=1 // pred_region
      %42 = dma.done [#allocation7], 1024
    $region21: #{tpu_custom_call.1} parent=1 // pred_fallthru
      _
    %p43 = scmp.eq.s32.totalorder 0, 0
    // Predicated region
    $region22: #{tpu_custom_call.1} parent=1 // pred_check
      %p44 = pneg %p43
    $region23: #{tpu_custom_call.1} parent=1 // pred_check_branch
      %46 = sbr.rel (%p44) target = $region25
    $region24: #{tpu_custom_call.1} parent=1 // pred_region
      %47 = vst [vmem:[#allocation2] sm:$0xff] 0.0
      %48 = vst [vmem:[#allocation2 + $0x8] sm:$0xff] 0.0
      %49 = vst [vmem:[#allocation2 + $0x10] sm:$0xff] 0.0
      %50 = vst [vmem:[#allocation2 + $0x18] sm:$0xff] 0.0
    $region25: #{tpu_custom_call.1} parent=1 // pred_fallthru
      _
    %v51 = vld [vmem:[#allocation2] sm:$0xff]
    %v52 = vld [vmem:[#allocation2 + $0x8] sm:$0xff]
    %v53 = vld [vmem:[#allocation2 + $0x10] sm:$0xff]
    %v54 = vld [vmem:[#allocation2 + $0x18] sm:$0xff]
    %v55 = vld [vmem:[#allocation3] sm:$0xff]
    %v56 = vld [vmem:[#allocation3 + $0x8] sm:$0xff]
    %v57 = vld [vmem:[#allocation3 + $0x10] sm:$0xff]
    %v58 = vld [vmem:[#allocation3 + $0x18] sm:$0xff]
    %v59 = vld [vmem:[#allocation6] sm:$0xff]
    %v60 = vld [vmem:[#allocation6 + $0x8] sm:$0xff]
    %v61 = vld [vmem:[#allocation6 + $0x10] sm:$0xff]
    %v62 = vld [vmem:[#allocation6 + $0x18] sm:$0xff]
    %v63 = vld [vmem:[#allocation6 + $0x20] sm:$0xff]
    %v64 = vld [vmem:[#allocation6 + $0x28] sm:$0xff]
    %v65 = vld [vmem:[#allocation6 + $0x30] sm:$0xff]
    %v66 = vld [vmem:[#allocation6 + $0x38] sm:$0xff]
    %vm67 = vcmask 523264
    %v69 = vsel %vm67, %v55, 0
    %v72 = vsel %vm67, %v56, 0
    %v75 = vsel %vm67, %v57, 0
    %v78 = vsel %vm67, %v58, 0
    %80 = vmatprep.subr.mxu0 0.0
    %81 = vmatpush1.msra.mxu0 %v59
    %82 = vmatprep.subr.mxu0 0.0
    %83 = vmatpush1.msra.mxu0 %v60
    %84 = vmatprep.subr.mxu0 0.0
    %85 = vmatpush1.msra.mxu0 %v61
    %86 = vmatprep.subr.mxu0 0.0
    %87 = vmatpush1.msra.mxu0 %v62
    %88 = vmatprep.subr.mxu0 0.0
    %89 = vmatpush1.msra.mxu0 %v63
    %90 = vmatprep.subr.mxu0 0.0
    %91 = vmatpush1.msra.mxu0 %v64
    %92 = vmatprep.subr.mxu0 0.0
    %93 = vmatpush1.msra.mxu0 %v65
    %94 = vmatprep.subr.mxu0 0.0
    %95 = vmatpush1.msra.mxu0 %v66
    %96 = vmatprep.subr.mxu0 0.0
    %97 = vmatpush1.msra.mxu0 0.0
    %98 = vmatprep.subr.mxu0 0.0
    %99 = vmatpush1.msra.mxu0 0.0
    %100 = vmatprep.subr.mxu0 0.0
    %101 = vmatpush1.msra.mxu0 0.0
    %102 = vmatprep.subr.mxu0 0.0
    %103 = vmatpush1.msra.mxu0 0.0
    %104 = vmatprep.subr.mxu0 0.0
    %105 = vmatpush1.msra.mxu0 0.0
    %106 = vmatprep.subr.mxu0 0.0
    %107 = vmatpush1.msra.mxu0 0.0
    %108 = vmatprep.subr.mxu0 0.0
    %109 = vmatpush1.msra.mxu0 0.0
    %110 = vmatprep.subr.mxu0 0.0
    %111 = vmatpush1.msra.mxu0 0.0
    %112 = vmatprep.subr.mxu0 0.0
    %113 = vmatpush1.msra.mxu0 0.0
    %114 = vmatprep.subr.mxu0 0.0
    %115 = vmatpush1.msra.mxu0 0.0
    %116 = vmatprep.subr.mxu0 0.0
    %117 = vmatpush1.msra.mxu0 0.0
    %118 = vmatprep.subr.mxu0 0.0
    %119 = vmatpush1.msra.mxu0 0.0
    %120 = vmatprep.subr.mxu0 0.0
    %121 = vmatpush1.msra.mxu0 0.0
    %122 = vmatprep.subr.mxu0 0.0
    %123 = vmatpush1.msra.mxu0 0.0
    %124 = vmatprep.subr.mxu0 0.0
    %125 = vmatpush1.msra.mxu0 0.0
    %126 = vmatprep.subr.mxu0 0.0
    %127 = vmatpush1.msra.mxu0 0.0
    %128 = vmatprep.subr.mxu0 0.0
    %129 = vmatpush1.msra.mxu0 0.0
    %130 = vmatprep.subr.mxu0 0.0
    %131 = vmatpush1.msra.mxu0 0.0
    %132 = vmatprep.subr.mxu0 0.0
    %133 = vmatpush1.msra.mxu0 0.0
    %134 = vmatprep.subr.mxu0 0.0
    %135 = vmatpush1.msra.mxu0 0.0
    %136 = vmatprep.subr.mxu0 0.0
    %137 = vmatpush1.msra.mxu0 0.0
    %138 = vmatprep.subr.mxu0 0.0
    %139 = vmatpush1.msra.mxu0 0.0
    %140 = vmatprep.subr.mxu0 0.0
    %141 = vmatpush1.msra.mxu0 0.0
    %142 = vmatprep.subr.mxu0 0.0
    %143 = vmatpush1.msra.mxu0 0.0
    %144 = vmatprep.mubr.f32.mxu0 0.0
    %145 = vmatmul.mubr.f32.gmra.mrb[0].mxu0 %v69
    %v146 = vpop.f32.mrb[0].mxu0
    %v147 = vadd.f32 0.0, %v146
    %v148 = vpop.f32.mrb[0].mxu0
    %149 = vmatprep.mubr.f32.mxu0 0.0
    %150 = vmatmul.mubr.f32.gmra.mrb[0].mxu0 %v72
    %v151 = vpop.f32.mrb[0].mxu0
    %v152 = vadd.f32 0.0, %v151
    %v153 = vpop.f32.mrb[0].mxu0
    %154 = vmatprep.mubr.f32.mxu0 0.0
    %155 = vmatmul.mubr.f32.gmra.mrb[0].mxu0 %v75
    %v156 = vpop.f32.mrb[0].mxu0
    %v157 = vadd.f32 0.0, %v156
    %v158 = vpop.f32.mrb[0].mxu0
    %159 = vmatprep.mubr.f32.mxu0 0.0
    %160 = vmatmul.mubr.f32.gmra.mrb[0].mxu0 %v78
    %v161 = vpop.f32.mrb[0].mxu0
    %v162 = vadd.f32 0.0, %v161
    %v163 = vpop.f32.mrb[0].mxu0
    %164 = vdwg.mxu0
    %v165 = vadd.f32 %v51, %v147
    %v166 = vadd.f32 %v52, %v152
    %v167 = vadd.f32 %v53, %v157
    %v168 = vadd.f32 %v54, %v162
    %169 = vst [vmem:[#allocation2] sm:$0xff] %v165
    %170 = vst [vmem:[#allocation2 + $0x8] sm:$0xff] %v166
    %171 = vst [vmem:[#allocation2 + $0x10] sm:$0xff] %v167
    %172 = vst [vmem:[#allocation2 + $0x18] sm:$0xff] %v168
    // Predicated region
    $region26: #{tpu_custom_call.1} parent=1 // pred_check
      %p173 = pneg %p43
    $region27: #{tpu_custom_call.1} parent=1 // pred_check_branch
      %175 = sbr.rel (%p173) target = $region29
    $region28: #{tpu_custom_call.1} parent=1 // pred_region
      %v176 = vld [vmem:[#allocation2] sm:$0xff]
      %v177 = vld [vmem:[#allocation2 + $0x8] sm:$0xff]
      %v178 = vld [vmem:[#allocation2 + $0x10] sm:$0xff]
      %v179 = vld [vmem:[#allocation2 + $0x18] sm:$0xff]
      %v180 = vld [vmem:[%s2] sm:$0x1]
      %v182 = vlaneseq
      %v183 = vshrl.u32 %v182, 7
      %v184 = vsub.s32 0, %v183
      %v185 = vrot.slane %v180, %v184
      %v187 = vadd.f32 %v176, %v185
      %v188 = vadd.f32 %v177, %v185
      %v189 = vadd.f32 %v178, %v185
      %v190 = vadd.f32 %v179, %v185
      %191 = vst [vmem:[#allocation8] sm:$0xff] %v187
      %192 = vst [vmem:[#allocation8 + $0x8] sm:$0xff] %v188
      %193 = vst [vmem:[#allocation8 + $0x10] sm:$0xff] %v189
      %194 = vst [vmem:[#allocation8 + $0x18] sm:$0xff] %v190
    $region29: #{tpu_custom_call.1} parent=1 // pred_fallthru
      _
    // Predicated region
    $region30: #{tpu_custom_call.1} parent=1 // pred_check
      _
    $region31: #{tpu_custom_call.1} parent=1 // pred_check_branch
      %196 = sbr.rel (0) target = $region33
    $region32: #{tpu_custom_call.1} parent=1 // pred_region
      %s198 = ssub.s32 512, 512
      %199 = vsyncadd [#allocation5], %s198
      %s200 = sshll.u32 [#allocation8], 4
      %s201 = int_to_ptr.vmem [resolvable:$true] %s200
      %206 = dma.vmem_to_hbm [thread:$0]  %s201, 512, %s3, [#allocation5], 128, 128, 8
    $region33: #{tpu_custom_call.1} parent=1 // pred_fallthru
      _
    // Predicated region
    $region34: #{tpu_custom_call.1} parent=1 // pred_check
      _
    $region35: #{tpu_custom_call.1} parent=1 // pred_check_branch
      %208 = sbr.rel (0) target = $region37
    $region36: #{tpu_custom_call.1} parent=1 // pred_region
      %209 = dma.done [#allocation5], 512
    $region37: #{tpu_custom_call.1} parent=1 // pred_fallthru
      _
    %210 = vsyncpa [#allocation4], 1
    %211 = vsyncpa [#allocation7], 1
    %212 = vsyncpa [#allocation5], 1

</llo_original>
